<compile_context>
chip_gen: v6e
topology: v6e:2x2x1
jax: 0.10.0
libtpu: 0.0.40
codegen_flags: <defaults>
</compile_context>

<pallas_src>
import functools

import jax
import jax.numpy as jnp
import numpy as np
from jax import lax
from jax.experimental import pallas as pl
from jax.experimental.pallas import tpu as pltpu

EPS = 1e-12  # matches the validated numpy reference
# TODO(synk): torch's CosineEmbeddingLoss clamps each norm at eps=1e-8 (max(norm, eps));
# we add EPS to the squared norms instead (same convention as the validated reference).


def _round_up(a, b):
    return pl.cdiv(a, b) * b


# ---------------------------------------------------------------------------
# Kernel: per-class raw sums, normalized sums and pixel counts (one pixel pass)
# ---------------------------------------------------------------------------
def _class_stats_kernel(x_ref, t_ref, stats_ref, counts_ref, *, num_classes, ragged):
    K = num_classes

    @pl.when(pl.program_id(2) == 0)
    def _():
        stats_ref[...] = jnp.zeros_like(stats_ref)
        counts_ref[...] = jnp.zeros_like(counts_ref)

    x = x_ref[...]            # (C, T): channels on sublanes, pixels on lanes (input dtype)
    t = t_ref[...]            # (1, T): int32 labels, lane-dense

    if ragged:
        # Last pixel tile extends past H*W: those lanes hold garbage VMEM (only the
        # labels were padded, with label == num_classes).  Zero the embeddings there
        # so NaN/Inf garbage cannot reach the matmul / rsqrt.
        x = jnp.where(t < K, x, jnp.zeros_like(x))

    # Single-matmul path needs one RHS dtype; f32 keeps the normalized sums exact.
    # (bf16 inputs are still DMA'd as bf16 and cast here.)
    xf = x.astype(jnp.float32)

    norm2 = jnp.sum(xf * xf, axis=0, keepdims=True)                      # (1, T)
    invnorm = lax.rsqrt(norm2 + EPS)                                     # (1, T), EUP

    # One-hot over a sublane class axis; padded / invalid labels match no row.
    class_ids = lax.broadcasted_iota(jnp.int32, (K, xf.shape[1]), 0)     # (K, T)
    onehot = (class_ids == t).astype(jnp.float32)                        # (K, T)

    # Scale the ONE-HOT (K rows) instead of the embeddings (C rows) and stack both
    # LHS variants so a single MXU pass produces [sums ; normalized sums].
    lhs = jnp.concatenate([onehot, onehot * invnorm], axis=0)            # (2K, T)

    dims = (((1,), (1,)), ((), ()))  # contract the pixel (lane) axis on the MXU
    stats_ref[...] += lax.dot_general(lhs, xf, dims,
                                      preferred_element_type=jnp.float32)  # (2K, C)
    counts_ref[...] += jnp.sum(onehot, axis=1, keepdims=True)              # (K, 1)


# ---------------------------------------------------------------------------
# Wrapper
# ---------------------------------------------------------------------------
def embedding_loss(inputs_nchw, targets, num_classes, *, tile_hw=8192):
    N, C, H, W = inputs_nchw.shape
    HW = H * W
    K = num_classes

    # Pure reshapes -- no transpose / extra HBM round trip. Keep the input dtype.
    x = inputs_nchw.reshape(N, C, HW)
    t = targets.reshape(N, 1, HW).astype(jnp.int32)

    # ---- lane-tile choice: big (amortize ~0.35us/grid-step), balanced over HW,
    # clamped against a generation-aware VMEM budget for double-buffered inputs.
    try:
        vmem_bytes = int(getattr(pltpu.get_tpu_info(), "vmem_capacity_bytes"))
    except Exception:
        vmem_bytes = 64 * 1024 * 1024  # conservative (v7x physical VMEM)
    in_budget = min(16 * 1024 * 1024, vmem_bytes // 8)     # double-buffered input budget
    bytes_per_lane = C * x.dtype.itemsize + 4              # embedding column + int32 label
    tile_cap = max(128, (in_budget // (2 * bytes_per_lane)) // 128 * 128)

    tile = min(tile_hw, tile_cap, _round_up(HW, 128))
    n_tiles = pl.cdiv(HW, tile)
    tile = _round_up(pl.cdiv(HW, n_tiles), 128)             # balance tiles over HW
    n_tiles = pl.cdiv(HW, tile)
    if n_tiles > 1 and n_tiles % 2 == 1:
        # Prefer an even tile count so the pixel axis can split across v7x's 2 cores.
        tile_e = _round_up(pl.cdiv(HW, n_tiles + 1), 128)
        if pl.cdiv(HW, tile_e) == n_tiles + 1:
            tile, n_tiles = tile_e, n_tiles + 1
    n_split = 2 if (n_tiles >= 2 and n_tiles % 2 == 0) else 1
    tiles_per_split = n_tiles // n_split

    # ---- pad ONLY the labels (tiny) to a whole number of tiles; x is never copied.
    HW_pad = n_tiles * tile
    ragged = HW_pad != HW
    if ragged:
        t = jnp.pad(t, ((0, 0), (0, 0), (0, HW_pad - HW)), constant_values=num_classes)

    grid = (N, n_split, tiles_per_split)

    stats_n, counts_n = pl.pallas_call(
        functools.partial(_class_stats_kernel, num_classes=num_classes, ragged=ragged),
        out_shape=(jax.ShapeDtypeStruct((N, n_split, 2 * K, C), jnp.float32),
                   jax.ShapeDtypeStruct((N, n_split, K, 1), jnp.float32)),
        grid_spec=pltpu.PrefetchScalarGridSpec(
            num_scalar_prefetch=0, grid=grid,
            in_specs=[pl.BlockSpec((None, C, tile),
                                   lambda n, s, p: (n, 0, s * tiles_per_split + p)),
                      pl.BlockSpec((None, 1, tile),
                                   lambda n, s, p: (n, 0, s * tiles_per_split + p))],
            out_specs=[pl.BlockSpec((None, None, 2 * K, C),
                                    lambda n, s, p: (n, s, 0, 0)),
                       pl.BlockSpec((None, None, K, 1),
                                    lambda n, s, p: (n, s, 0, 0))]),
        compiler_params=pltpu.CompilerParams(
            dimension_semantics=("parallel", "parallel", "arbitrary")),
    )(x, t)

    # ---- tiny (K, C) epilogue in plain JAX (O(K^2 * C), effectively free) ----
    stats = jnp.sum(stats_n, axis=(0, 1))        # (2K, C)
    counts = jnp.sum(counts_n, axis=(0, 1))      # (K, 1)
    sums, nsums = stats[:K], stats[K:]

    valid = counts > 0.0                                   # (K, 1) non-empty classes
    sum_pixel = jnp.maximum(counts, 1.0)                   # max(mask.sum(), 1)
    centers = sums / sum_pixel                             # (K, C); empty classes stay 0

    # similarity loss: mean_p[1 - cos(c_i, x_p)] == 1 - dot(nsums_i, c_i)/(||c_i||_eps * cnt_i)
    cn2 = jnp.sum(centers * centers, axis=1, keepdims=True) + EPS      # (K, 1)
    dot_nc = jnp.sum(nsums * centers, axis=1, keepdims=True)           # (K, 1)
    sim_per = 1.0 - dot_nc / (jnp.sqrt(cn2) * sum_pixel)
    sim_loss = jnp.sum(jnp.where(valid, sim_per, 0.0))

    # inter-class diff loss from the (K, K) Gram matrix
    gram = centers @ centers.T                                         # (K, K)
    norms = jnp.sqrt(jnp.sum(centers * centers, axis=1) + EPS)         # (K,)
    cosmat = gram / (norms[:, None] * norms[None, :])
    eye = jnp.eye(K, dtype=jnp.float32)
    per_row = jnp.sum(eye * (1.0 - cosmat) + (1.0 - eye) * jnp.maximum(cosmat, 0.0),
                      axis=1) / K                                      # (K,)
    diff_loss = jnp.sum(jnp.where(valid[:, 0], per_row, 0.0))

    return (sim_loss + diff_loss).reshape(1)   # torch returns a shape-(1,) tensor


# ---------------------------------------------------------------------------
# Pure numpy reference (mirrors the PyTorch forward)
# ---------------------------------------------------------------------------
def _reference_np(x_nchw, t, num_classes):
    x = np.asarray(x_nchw, np.float32)
    t = np.asarray(t)
    N, C, H, W = x.shape
    xf = np.transpose(x, (0, 2, 3, 1)).reshape(-1, C)
    tf = t.reshape(-1)

    centers = np.zeros((num_classes, C), np.float32)
    valid = np.zeros(num_classes, bool)
    sim = 0.0
    for i in range(num_classes):
        sel = tf == i
        cnt = int(sel.sum())
        if cnt == 0:
            continue
        valid[i] = True
        pix = xf[sel]
        center = pix.sum(0) / max(cnt, 1)
        centers[i] = center
        dot = (pix * center[None]).sum(1)
        cos = dot / np.sqrt(((pix * pix).sum(1) + EPS) * ((center * center).sum() + EPS))
        sim += float(np.mean(1.0 - cos))

    diff = 0.0
    for i in range(num_classes):
        if not valid[i]:
            continue
        ci = centers[i]
        per = []
        for j in range(num_classes):
            cj = centers[j]
            cos = (cj * ci).sum() / np.sqrt(((cj * cj).sum() + EPS) * ((ci * ci).sum() + EPS))
            per.append(1.0 - cos if j == i else max(cos, 0.0))
        diff += float(np.mean(per))
    return np.float32(sim + diff)


if __name__ == "__main__":
    key = jax.random.PRNGKey(0)
    kx, kt = jax.random.split(key)

    N, C, H, W = 2, 32, 16, 16
    num_classes = 5  # the module has no learnable parameters; num_classes comes from config

    inputs = jax.random.normal(kx, (N, C, H, W), dtype=jnp.float32)
    # labels only cover classes 0..3 so class 4 exercises the empty-class (mask_list) path
    targets = jax.random.randint(kt, (N, H, W), 0, num_classes - 1, dtype=jnp.int32)

    out = jax.block_until_ready(embedding_loss(inputs, targets, num_classes))

    ref = _reference_np(np.asarray(inputs), np.asarray(targets), num_classes)
    assert out.shape == (1,)
    np.testing.assert_allclose(np.asarray(out)[0], ref, rtol=1e-4, atol=1e-5)
    print("KERNEL_OK")
</pallas_src>

<mosaic_0001>
module attributes {stable_mosaic.version = 11 : i64} {
  func.func @_class_stats_kernel(%arg0: i32, %arg1: i32, %arg2: i32, %arg3: memref<1x32x256xf32, #tpu.memory_space<vmem>>, %arg4: memref<1x1x256xi32, #tpu.memory_space<vmem>>, %arg5: memref<1x1x10x32xf32, #tpu.memory_space<vmem>>, %arg6: memref<1x1x5x1xf32, #tpu.memory_space<vmem>>) attributes {dimension_semantics = [#tpu.dimension_semantics<parallel>, #tpu.dimension_semantics<parallel>, #tpu.dimension_semantics<arbitrary>], iteration_bounds = array<i64: 2, 1, 1>, scalar_prefetch = 0 : i64, scratch_operands = 0 : i64, tpu.core_type = #tpu.core_type<tc>, window_params = [{transform_indices = @transform_0, window_bounds = array<i64: 1, 32, 256>}, {transform_indices = @transform_1, window_bounds = array<i64: 1, 1, 256>}, {transform_indices = @transform_2, window_bounds = array<i64: 1, 1, 10, 32>}, {transform_indices = @transform_3, window_bounds = array<i64: 1, 1, 5, 1>}]} {
    %c0_i32 = arith.constant 0 : i32
    %0 = arith.cmpi eq, %arg2, %c0_i32 : i32
    %1 = arith.extui %0 : i1 to i32
    %c0_i32_0 = arith.constant 0 : i32
    %2 = arith.cmpi ne, %1, %c0_i32_0 : i32
    scf.if %2 {
      %cst_25 = arith.constant 0.000000e+00 : f32
      %36 = vector.broadcast %cst_25 : f32 to vector<10x32xf32>
      %c0_26 = arith.constant 0 : index
      %c0_27 = arith.constant 0 : index
      %c0_28 = arith.constant 0 : index
      %c0_29 = arith.constant 0 : index
      %37 = vector.load %arg5[%c0_26, %c0_27, %c0_28, %c0_29] : memref<1x1x10x32xf32, #tpu.memory_space<vmem>>, vector<1x1x10x32xf32>
      %38 = vector.shape_cast %37 : vector<1x1x10x32xf32> to vector<10x32xf32>
      %39 = vector.shape_cast %36 : vector<10x32xf32> to vector<1x1x10x32xf32>
      tpu.vector_store %arg5[%c0_26, %c0_27, %c0_28, %c0_29], %39 {strides = array<i32>} : memref<1x1x10x32xf32, #tpu.memory_space<vmem>>, vector<1x1x10x32xf32>,
      %cst_30 = arith.constant 0.000000e+00 : f32
      %40 = vector.broadcast %cst_30 : f32 to vector<5x1xf32>
      %c0_31 = arith.constant 0 : index
      %c0_32 = arith.constant 0 : index
      %c0_33 = arith.constant 0 : index
      %c0_34 = arith.constant 0 : index
      %41 = vector.load %arg6[%c0_31, %c0_32, %c0_33, %c0_34] : memref<1x1x5x1xf32, #tpu.memory_space<vmem>>, vector<1x1x5x1xf32>
      %42 = vector.shape_cast %41 : vector<1x1x5x1xf32> to vector<5x1xf32>
      %43 = vector.shape_cast %40 : vector<5x1xf32> to vector<1x1x5x1xf32>
      tpu.vector_store %arg6[%c0_31, %c0_32, %c0_33, %c0_34], %43 {strides = array<i32>} : memref<1x1x5x1xf32, #tpu.memory_space<vmem>>, vector<1x1x5x1xf32>,
    } else {
    }
    %c0 = arith.constant 0 : index
    %c0_1 = arith.constant 0 : index
    %c0_2 = arith.constant 0 : index
    %3 = vector.load %arg3[%c0, %c0_1, %c0_2] : memref<1x32x256xf32, #tpu.memory_space<vmem>>, vector<1x32x256xf32>
    %4 = vector.shape_cast %3 : vector<1x32x256xf32> to vector<32x256xf32>
    %c0_3 = arith.constant 0 : index
    %c0_4 = arith.constant 0 : index
    %c0_5 = arith.constant 0 : index
    %5 = vector.load %arg4[%c0_3, %c0_4, %c0_5] : memref<1x1x256xi32, #tpu.memory_space<vmem>>, vector<1x1x256xi32>
    %6 = vector.shape_cast %5 : vector<1x1x256xi32> to vector<1x256xi32>
    %7 = arith.mulf %4, %4 : vector<32x256xf32>
    %cst = arith.constant dense<0.000000e+00> : vector<256xf32>
    %8 = vector.multi_reduction <add>, %7, %cst [0] : vector<32x256xf32> to vector<256xf32>
    %9 = vector.shape_cast %8 : vector<256xf32> to vector<1x256xf32>
    %cst_6 = arith.constant 9.99999996E-13 : f32
    %10 = vector.broadcast %cst_6 : f32 to vector<1x256xf32>
    %11 = arith.addf %9, %10 : vector<1x256xf32>
    %12 = math.rsqrt %11 : vector<1x256xf32>
    %13 = tpu.iota {dimensions = array<i32: 0>} : vector<5x256xi32>
    %14 = vector.broadcast %6 : vector<1x256xi32> to vector<5x256xi32>
    %15 = arith.cmpi eq, %13, %14 : vector<5x256xi32>
    %16 = arith.extui %15 : vector<5x256xi1> to vector<5x256xi32>
    %17 = arith.sitofp %16 : vector<5x256xi32> to vector<5x256xf32>
    %18 = vector.broadcast %12 : vector<1x256xf32> to vector<5x256xf32>
    %19 = arith.mulf %17, %18 : vector<5x256xf32>
    %20 = tpu.concatenate %17, %19 in 0 : vector<5x256xf32>, vector<5x256xf32> -> vector<10x256xf32>
    %c0_7 = arith.constant 0 : index
    %c0_8 = arith.constant 0 : index
    %c0_9 = arith.constant 0 : index
    %c0_10 = arith.constant 0 : index
    %21 = vector.load %arg5[%c0_7, %c0_8, %c0_9, %c0_10] : memref<1x1x10x32xf32, #tpu.memory_space<vmem>>, vector<1x1x10x32xf32>
    %22 = vector.shape_cast %21 : vector<1x1x10x32xf32> to vector<10x32xf32>
    %cst_11 = arith.constant dense<0.000000e+00> : vector<10x32xf32>
    %23 = tpu.matmul %20, %4, %cst_11 {dimension_numbers = #tpu.dot_dimension_numbers<[1], [1], [0], [0], [0, 0, 1, 0], [], []>} : vector<10x256xf32>, vector<32x256xf32>, vector<10x32xf32> -> vector<10x32xf32>
    %24 = arith.addf %22, %23 : vector<10x32xf32>
    %c0_12 = arith.constant 0 : index
    %c0_13 = arith.constant 0 : index
    %c0_14 = arith.constant 0 : index
    %c0_15 = arith.constant 0 : index
    %25 = vector.load %arg5[%c0_12, %c0_13, %c0_14, %c0_15] : memref<1x1x10x32xf32, #tpu.memory_space<vmem>>, vector<1x1x10x32xf32>
    %26 = vector.shape_cast %25 : vector<1x1x10x32xf32> to vector<10x32xf32>
    %27 = vector.shape_cast %24 : vector<10x32xf32> to vector<1x1x10x32xf32>
    tpu.vector_store %arg5[%c0_12, %c0_13, %c0_14, %c0_15], %27 {strides = array<i32>} : memref<1x1x10x32xf32, #tpu.memory_space<vmem>>, vector<1x1x10x32xf32>,
    %c0_16 = arith.constant 0 : index
    %c0_17 = arith.constant 0 : index
    %c0_18 = arith.constant 0 : index
    %c0_19 = arith.constant 0 : index
    %28 = vector.load %arg6[%c0_16, %c0_17, %c0_18, %c0_19] : memref<1x1x5x1xf32, #tpu.memory_space<vmem>>, vector<1x1x5x1xf32>
    %29 = vector.shape_cast %28 : vector<1x1x5x1xf32> to vector<5x1xf32>
    %cst_20 = arith.constant dense<0.000000e+00> : vector<5xf32>
    %30 = vector.multi_reduction <add>, %17, %cst_20 [1] : vector<5x256xf32> to vector<5xf32>
    %31 = vector.shape_cast %30 : vector<5xf32> to vector<5x1xf32>
    %32 = arith.addf %29, %31 : vector<5x1xf32>
    %c0_21 = arith.constant 0 : index
    %c0_22 = arith.constant 0 : index
    %c0_23 = arith.constant 0 : index
    %c0_24 = arith.constant 0 : index
    %33 = vector.load %arg6[%c0_21, %c0_22, %c0_23, %c0_24] : memref<1x1x5x1xf32, #tpu.memory_space<vmem>>, vector<1x1x5x1xf32>
    %34 = vector.shape_cast %33 : vector<1x1x5x1xf32> to vector<5x1xf32>
    %35 = vector.shape_cast %32 : vector<5x1xf32> to vector<1x1x5x1xf32>
    tpu.vector_store %arg6[%c0_21, %c0_22, %c0_23, %c0_24], %35 {strides = array<i32>} : memref<1x1x5x1xf32, #tpu.memory_space<vmem>>, vector<1x1x5x1xf32>,
    return
  }
  func.func @transform_0(%arg0: i32, %arg1: i32, %arg2: i32) -> (i32, i32, i32) {
    %c1_i32 = arith.constant 1 : i32
    %0 = arith.muli %arg1, %c1_i32 : i32
    %1 = arith.addi %0, %arg2 : i32
    %c0_i32 = arith.constant 0 : i32
    %c0_i32_0 = arith.constant 0 : i32
    return %arg0, %c0_i32, %1 : i32, i32, i32
  }
  func.func @transform_1(%arg0: i32, %arg1: i32, %arg2: i32) -> (i32, i32, i32) {
    %c1_i32 = arith.constant 1 : i32
    %0 = arith.muli %arg1, %c1_i32 : i32
    %1 = arith.addi %0, %arg2 : i32
    %c0_i32 = arith.constant 0 : i32
    %c0_i32_0 = arith.constant 0 : i32
    return %arg0, %c0_i32, %1 : i32, i32, i32
  }
  func.func @transform_2(%arg0: i32, %arg1: i32, %arg2: i32) -> (i32, i32, i32, i32) {
    %c0_i32 = arith.constant 0 : i32
    %c0_i32_0 = arith.constant 0 : i32
    %c0_i32_1 = arith.constant 0 : i32
    return %arg0, %arg1, %c0_i32, %c0_i32_0 : i32, i32, i32, i32
  }
  func.func @transform_3(%arg0: i32, %arg1: i32, %arg2: i32) -> (i32, i32, i32, i32) {
    %c0_i32 = arith.constant 0 : i32
    %c0_i32_0 = arith.constant 0 : i32
    %c0_i32_1 = arith.constant 0 : i32
    return %arg0, %arg1, %c0_i32, %c0_i32_0 : i32, i32, i32, i32
  }
}

</mosaic_0001>

<llo_original>
// kernel: tpu_custom_call.1
$region0: #{tpu_custom_call.1}
  #allocation0 [shape = 'u32[]', space=smem, size = 0x4, offset = 0x4, fixed_abs, tag = 'smem constant byte address 0x4 - core index']
  #allocation1 [shape = 'u32[144,128]{1,0:T(1,128)}', space=vmem, size = 0x12000, scoped, tag = 'internal scratch']
  %s0 = inlined_call_operand.hbm [shape: f32[2,32,256], index: 0, kind: input, shape index: {}]
  %s1 = inlined_call_operand.hbm [shape: s32[2,1,256], index: 1, kind: input, shape index: {}]
  %s2 = inlined_call_operand.vmem [shape: f32[2,1,10,32], index: 2, kind: output, shape index: {0}]
  %s3 = inlined_call_operand.vmem [shape: f32[2,1,5,1], index: 3, kind: output, shape index: {1}]
  %4 = xla_tuple %s2, %s3
  %s5 = sld [smem:[#allocation0]]
  $region61: #{tpu_custom_call.1} parent=0
    _
  %s7 = ssub.s32 1, %s5
  %s8 = scalar_select 0, %s7, %s5
  $region1: #{tpu_custom_call.1} parent=0
    #allocation2 [shape = 'u8[65536]{0}', space=vmem, size = 0x10000, scoped, tag = 'input window, operand 0']
    #allocation3 [shape = 's32[2]{0}', space=sflag, size = 0x8, scoped, tag = 'scoped memory for tpu_custom_call.1']
    #allocation4 [shape = 'u8[2048]{0}', space=vmem, size = 0x800, scoped, tag = 'input window, operand 1']
    #allocation5 [shape = 's32[2]{0}', space=sflag, size = 0x8, scoped, tag = 'scoped memory for tpu_custom_call.1']
    %9 = vsyncpa [#allocation3], 0
    %s10 = scalar_lea.sflag [#allocation3], 1
    %11 = vsyncpa %s10, 0
    %12 = vsyncpa [#allocation5], 0
    %s13 = scalar_lea.sflag [#allocation5], 1
    %14 = vsyncpa %s13, 0
    loop: start=0, step=1, limit=4
    $region2: #{tpu_custom_call.1} parent=1 // loop_pre_header
      _
    $region3: #{tpu_custom_call.1} parent=1 // loop_header
      %s16 = sphi 0, %s20
      %p17 = scmp.ge.s32.totalorder %s16, 4
      %s23 = sphi 0, %s42
      %s24 = sphi 0, %s38
      %s25 = sphi 0, %s34
      %s26 = sphi 0, %s23
      %s27 = sphi 0, %s24
      %s28 = sphi 0, %s25
      %s29 = sphi 0, %s26
      %s30 = sphi 0, %s27
      %s31 = sphi 0, %s28
      %s49 = sphi 0, %s51
      %s52 = sphi 0, %s49
      %s53 = sphi 0, %s52
      %s69 = sphi 0, %s53
      %s79 = sphi 0, %s81
      %s82 = sphi 0, %s79
      %s83 = sphi 0, %s82
      %s99 = sphi 0, %s83
      %s107 = sphi 0, %s109
      %s110 = sphi 0, %s107
      %s111 = sphi 0, %s110
      %s127 = sphi 0, %s111
      %s135 = sphi 0, %s137
      %s138 = sphi 0, %s135
      %s139 = sphi 0, %s138
      %s155 = sphi 0, %s139
    $region4: #{tpu_custom_call.1} parent=1 // loop_header_branch
      %19 = sbr.rel (%p17) target = $region8
    $region5: #{tpu_custom_call.1} parent=1 // loop_body
      %s21 = ssub.s32 %s16, 1
      %s22 = ssub.s32 %s16, 2
      %s32 = sadd.s32 1, %s25
      %p33 = scmp.ge.s32.totalorder %s32, 1
      %s34 = scalar_select %p33, 0, %s32
      %s35 = sadd.s32 1, %s24
      %s36 = scalar_select %p33, %s35, %s24
      %p37 = scmp.ge.s32.totalorder %s36, 1
      %s38 = scalar_select %p37, 0, %s36
      %s39 = sadd.s32 1, %s23
      %s40 = scalar_select %p37, %s39, %s23
      %p41 = scmp.ge.s32.totalorder %s40, 2
      %s42 = scalar_select %p41, 0, %s40
      %s43 = sadd.s32 %s24, %s25
      %s44 = sadd.s32 %s38, %s34
      %s45 = ssub.s32 %s23, %s42
      %s46 = ssub.s32 %s43, %s44
      %s47 = sor.u32 %s45, %s46
      %p48 = scmp.eq.s32.totalorder %s47, 0
      %s50 = sadd.s32 %s49, 1
      %s51 = scalar_select %p48, %s49, %s50
      %p54 = pneg %p48
      %p55 = scmp.eq.s32.totalorder %s16, 1
      %p56 = por %p54, %p55
      %p57 = scmp.ne.s32.totalorder %s49, %s52
      %p58 = scmp.eq.s32.totalorder %s16, 0
      %p59 = por %p57, %p58
      %p60 = scmp.ne.s32.totalorder %s49, %s52
      %p61 = scmp.eq.s32.totalorder %s21, 1
      %p62 = por %p60, %p61
      %p63 = scmp.ne.s32.totalorder %s52, %s53
      %p64 = scmp.eq.s32.totalorder %s21, 0
      %p65 = por %p63, %p64
      %p66 = scmp.ne.s32.totalorder %s52, %s53
      %p67 = scmp.eq.s32.totalorder %s22, 1
      %p68 = por %p66, %p67
      %p70 = scmp.ne.s32.totalorder %s53, %s69
      %p71 = scmp.eq.s32.totalorder %s22, 0
      %p72 = por %p70, %p71
      %s73 = sadd.s32 %s24, %s25
      %s74 = sadd.s32 %s38, %s34
      %s75 = ssub.s32 %s23, %s42
      %s76 = ssub.s32 %s73, %s74
      %s77 = sor.u32 %s75, %s76
      %p78 = scmp.eq.s32.totalorder %s77, 0
      %s80 = sadd.s32 %s79, 1
      %s81 = scalar_select %p78, %s79, %s80
      %p84 = pneg %p78
      %p85 = scmp.eq.s32.totalorder %s16, 1
      %p86 = por %p84, %p85
      %p87 = scmp.ne.s32.totalorder %s79, %s82
      %p88 = scmp.eq.s32.totalorder %s16, 0
      %p89 = por %p87, %p88
      %p90 = scmp.ne.s32.totalorder %s79, %s82
      %p91 = scmp.eq.s32.totalorder %s21, 1
      %p92 = por %p90, %p91
      %p93 = scmp.ne.s32.totalorder %s82, %s83
      %p94 = scmp.eq.s32.totalorder %s21, 0
      %p95 = por %p93, %p94
      %p96 = scmp.ne.s32.totalorder %s82, %s83
      %p97 = scmp.eq.s32.totalorder %s22, 1
      %p98 = por %p96, %p97
      %p100 = scmp.ne.s32.totalorder %s83, %s99
      %p101 = scmp.eq.s32.totalorder %s22, 0
      %p102 = por %p100, %p101
      %s103 = ssub.s32 %s23, %s42
      %s104 = ssub.s32 %s24, %s38
      %s105 = sor.u32 %s103, %s104
      %p106 = scmp.eq.s32.totalorder %s105, 0
      %s108 = sadd.s32 %s107, 1
      %s109 = scalar_select %p106, %s107, %s108
      %p112 = pneg %p106
      %p113 = scmp.eq.s32.totalorder %s16, 1
      %p114 = por %p112, %p113
      %p115 = scmp.ne.s32.totalorder %s107, %s110
      %p116 = scmp.eq.s32.totalorder %s16, 0
      %p117 = por %p115, %p116
      %p118 = scmp.ne.s32.totalorder %s107, %s110
      %p119 = scmp.eq.s32.totalorder %s21, 1
      %p120 = por %p118, %p119
      %p121 = scmp.ne.s32.totalorder %s110, %s111
      %p122 = scmp.eq.s32.totalorder %s21, 0
      %p123 = por %p121, %p122
      %p124 = scmp.ne.s32.totalorder %s110, %s111
      %p125 = scmp.eq.s32.totalorder %s22, 1
      %p126 = por %p124, %p125
      %p128 = scmp.ne.s32.totalorder %s111, %s127
      %p129 = scmp.eq.s32.totalorder %s22, 0
      %p130 = por %p128, %p129
      %s131 = ssub.s32 %s23, %s42
      %s132 = ssub.s32 %s24, %s38
      %s133 = sor.u32 %s131, %s132
      %p134 = scmp.eq.s32.totalorder %s133, 0
      %s136 = sadd.s32 %s135, 1
      %s137 = scalar_select %p134, %s135, %s136
      %p140 = pneg %p134
      %p141 = scmp.eq.s32.totalorder %s16, 1
      %p142 = por %p140, %p141
      %p143 = scmp.ne.s32.totalorder %s135, %s138
      %p144 = scmp.eq.s32.totalorder %s16, 0
      %p145 = por %p143, %p144
      %p146 = scmp.ne.s32.totalorder %s135, %s138
      %p147 = scmp.eq.s32.totalorder %s21, 1
      %p148 = por %p146, %p147
      %p149 = scmp.ne.s32.totalorder %s138, %s139
      %p150 = scmp.eq.s32.totalorder %s21, 0
      %p151 = por %p149, %p150
      %p152 = scmp.ne.s32.totalorder %s138, %s139
      %p153 = scmp.eq.s32.totalorder %s22, 1
      %p154 = por %p152, %p153
      %p156 = scmp.ne.s32.totalorder %s139, %s155
      %p157 = scmp.eq.s32.totalorder %s22, 0
      %p158 = por %p156, %p157
      %p159 = scmp.le.s32.totalorder 1, %s16
      %p160 = scmp.lt.s32.totalorder %s16, 3
      %p161 = pnand %p159, %p160
      %p162 = pneg %p161
      // Predicated region
      $region9: #{tpu_custom_call.1} parent=5 // pred_check
        _
      $region10: #{tpu_custom_call.1} parent=5 // pred_check_branch
        %164 = sbr.rel (%p161) target = $region12
      $region11: #{tpu_custom_call.1} parent=5 // pred_region
        %s165 = ssub.s32 %s16, 1
      $region12: #{tpu_custom_call.1} parent=5 // pred_fallthru
        _
      %p166 = scmp.lt.s32.totalorder %s16, 2
      // Predicated region
      $region13: #{tpu_custom_call.1} parent=5 // pred_check
        %p167 = pneg %p166
      $region14: #{tpu_custom_call.1} parent=5 // pred_check_branch
        %169 = sbr.rel (%p167) target = $region16
      $region15: #{tpu_custom_call.1} parent=5 // pred_region
        // Predicated region
        $region17: #{tpu_custom_call.1} parent=15 // pred_check
          %p170 = pneg %p59
        $region18: #{tpu_custom_call.1} parent=15 // pred_check_branch
          %172 = sbr.rel (%p170) target = $region20
        $region19: #{tpu_custom_call.1} parent=15 // pred_region
          %s173 = sand.u32 %s49, 1
          %s174 = scalar_lea.sflag [#allocation3], %s173
          %s175 = sand.u32 %s49, 1
          %s176 = smul.addr %s175, 64
          %s177 = scalar_lea.vmem [#allocation2], %s176
          %s178 = sadd.s32 %s24, %s25
          %s179 = smul.u32 2, %s178
          %s181 = ssub.s32 1024, 1024
          %182 = vsyncadd %s174, %s181
          %s183 = smul.addr %s23, 8
          %s184 = sadd.s32 %s179, %s183
          %s185 = smul.addr %s184, 128
          %s186 = scalar_lea.hbm %s0, %s185
          %s187 = sshll.u32 %s177, 4
          %s188 = int_to_ptr.vmem [resolvable:$true] %s187
          %193 = dma.hbm_to_vmem [thread:$0]  %s186, 1024, %s188, %s174, 256, 256, 16
        $region20: #{tpu_custom_call.1} parent=15 // pred_fallthru
          _
        // Predicated region
        $region21: #{tpu_custom_call.1} parent=15 // pred_check
          %p194 = pneg %p89
        $region22: #{tpu_custom_call.1} parent=15 // pred_check_branch
          %196 = sbr.rel (%p194) target = $region24
        $region23: #{tpu_custom_call.1} parent=15 // pred_region
          %s197 = sand.u32 %s79, 1
          %s198 = scalar_lea.sflag [#allocation5], %s197
          %s199 = sand.u32 %s79, 1
          %s200 = smul.addr %s199, 2
          %s201 = scalar_lea.vmem [#allocation4], %s200
          %s202 = sadd.s32 %s24, %s25
          %s203 = smul.u32 2, %s202
          %s205 = ssub.s32 32, 32
          %206 = vsyncadd %s198, %s205
          %s207 = smul.addr %s23, 2
          %s208 = sadd.s32 %s203, %s207
          %s209 = smul.addr %s208, 16
          %s210 = scalar_lea.hbm %s1, %s209
          %s212 = sshll.u32 %s201, 4
          %s213 = int_to_ptr.vmem [resolvable:$true] %s212
          %215 = dma.hbm_to_vmem [thread:$0]  %s210, 32, %s213, %s198
        $region24: #{tpu_custom_call.1} parent=15 // pred_fallthru
          _
      $region16: #{tpu_custom_call.1} parent=5 // pred_fallthru
        _
      %p216 = scmp.le.s32.totalorder 1, %s16
      %p217 = scmp.lt.s32.totalorder %s16, 3
      %p218 = pnand %p216, %p217
      %p219 = pneg %p218
      // Predicated region
      $region25: #{tpu_custom_call.1} parent=5 // pred_check
        _
      $region26: #{tpu_custom_call.1} parent=5 // pred_check_branch
        %221 = sbr.rel (%p218) target = $region28
      $region27: #{tpu_custom_call.1} parent=5 // pred_region
        %s222 = ssub.s32 %s16, 1
        %s223 = sand.u32 %s52, 1
        %s224 = scalar_lea.sflag [#allocation3], %s223
        %s225 = sand.u32 %s52, 1
        %s226 = smul.addr %s225, 64
        %s227 = scalar_lea.vmem [#allocation2], %s226
        // Predicated region
        $region29: #{tpu_custom_call.1} parent=27 // pred_check
          %p228 = pneg %p65
        $region30: #{tpu_custom_call.1} parent=27 // pred_check_branch
          %230 = sbr.rel (%p228) target = $region32
        $region31: #{tpu_custom_call.1} parent=27 // pred_region
          %231 = dma.done %s224, 1024
        $region32: #{tpu_custom_call.1} parent=27 // pred_fallthru
          _
        %s232 = sand.u32 %s82, 1
        %s233 = scalar_lea.sflag [#allocation5], %s232
        %s234 = sand.u32 %s82, 1
        %s235 = smul.addr %s234, 2
        %s236 = scalar_lea.vmem [#allocation4], %s235
        // Predicated region
        $region33: #{tpu_custom_call.1} parent=27 // pred_check
          %p237 = pneg %p95
        $region34: #{tpu_custom_call.1} parent=27 // pred_check_branch
          %239 = sbr.rel (%p237) target = $region36
        $region35: #{tpu_custom_call.1} parent=27 // pred_region
          %240 = dma.done %s233, 32
        $region36: #{tpu_custom_call.1} parent=27 // pred_fallthru
          _
        %s241 = sand.u32 %s52, 1
        %s242 = scalar_lea.sflag [#allocation3], %s241
        %s243 = sand.u32 %s52, 1
        %s244 = smul.addr %s243, 64
        %s245 = scalar_lea.vmem [#allocation2], %s244
        %p246 = pneg %p65
        %p247 = pneg %p62
        %s248 = sand.u32 %s82, 1
        %s249 = scalar_lea.sflag [#allocation5], %s248
        %s250 = sand.u32 %s82, 1
        %s251 = smul.addr %s250, 2
        %s252 = scalar_lea.vmem [#allocation4], %s251
        %p253 = pneg %p95
        %p254 = pneg %p92
        %p255 = pneg %p123
        %p256 = pneg %p120
        %p257 = scmp.lt.s32.totalorder %s26, 1
        %s258 = scalar_select %p257, %s26, 1
        %p259 = scmp.lt.s32.totalorder %s27, 0
        %s260 = scalar_select %p259, %s27, 0
        %s261 = smul.addr %s260, 2
        %s262 = smul.addr %s258, 2
        %s263 = sadd.s32 %s261, %s262
        %s264 = smul.addr %s263, 8
        %s265 = scalar_lea.vmem %s2, %s264
        %p266 = pneg %p151
        %p267 = pneg %p148
        %p268 = scmp.lt.s32.totalorder %s26, 1
        %s269 = scalar_select %p268, %s26, 1
        %p270 = scmp.lt.s32.totalorder %s27, 0
        %s271 = scalar_select %p270, %s27, 0
        %s272 = sadd.s32 %s271, %s269
        %s273 = smul.addr %s272, 8
        %s274 = scalar_lea.vmem %s3, %s273
        %s275 = sadd.s32 %s27, %s28
        %s276 = smul.u32 2, %s275
        %s277 = sadd.s32 %s27, %s28
        %s278 = smul.u32 2, %s277
        %p279 = scmp.lt.s32.totalorder %s26, 1
        %s280 = scalar_select %p279, %s26, 1
        %p281 = scmp.lt.s32.totalorder %s27, 0
        %s282 = scalar_select %p281, %s27, 0
        %s283 = smul.addr %s282, 2
        %s284 = smul.addr %s280, 2
        %s285 = sadd.s32 %s283, %s284
        %s286 = smul.addr %s285, 8
        %s287 = scalar_lea.vmem %s2, %s286
        %p288 = scmp.lt.s32.totalorder %s26, 1
        %s289 = scalar_select %p288, %s26, 1
        %p290 = scmp.lt.s32.totalorder %s27, 0
        %s291 = scalar_select %p290, %s27, 0
        %s292 = sadd.s32 %s291, %s289
        %s293 = smul.addr %s292, 8
        %s294 = scalar_lea.vmem %s3, %s293
        %p295 = scmp.eq.s32.totalorder %s28, 0
        // Predicated region
        $region37: #{tpu_custom_call.1} parent=27 // pred_check
          %p296 = pneg %p295
        $region38: #{tpu_custom_call.1} parent=27 // pred_check_branch
          %298 = sbr.rel (%p296) target = $region40
        $region39: #{tpu_custom_call.1} parent=27 // pred_region
          %vm299 = vcmask 261120
          %300 = vst.msk [vmem:[%s287] sm:$0xff] %vm299, 0.0
          %vm301 = vcmask 254976
          %302 = vst.msk [vmem:[%s287 + $0x8] sm:$0x3] %vm301, 0.0
          %vm303 = vcmask 4096
          %304 = vst.msk [vmem:[%s294] sm:$0x1f] %vm303, 0.0
        $region40: #{tpu_custom_call.1} parent=27 // pred_fallthru
          _
        %v305 = vld [vmem:[%s227] sm:$0xff]
        %v306 = vld [vmem:[%s227 + $0x8] sm:$0xff]
        %v307 = vld [vmem:[%s227 + $0x10] sm:$0xff]
        %v308 = vld [vmem:[%s227 + $0x18] sm:$0xff]
        %v309 = vld [vmem:[%s227 + $0x20] sm:$0xff]
        %v310 = vld [vmem:[%s227 + $0x28] sm:$0xff]
        %v311 = vld [vmem:[%s227 + $0x30] sm:$0xff]
        %v312 = vld [vmem:[%s227 + $0x38] sm:$0xff]
        %v313 = vld [vmem:[%s236] sm:$0x3]
        %v314 = vmul.f32 %v305, %v305
        %v315 = vmul.f32 %v306, %v306
        %v316 = vmul.f32 %v307, %v307
        %v317 = vmul.f32 %v308, %v308
        %v318 = vmul.f32 %v309, %v309
        %v319 = vmul.f32 %v310, %v310
        %v320 = vmul.f32 %v311, %v311
        %v321 = vmul.f32 %v312, %v312
        %v322 = vadd.f32 %v314, %v316
        %v323 = vadd.f32 %v322, %v318
        %v324 = vadd.f32 %v323, %v320
        %v325 = vrot.slane %v324, 4
        %v326 = vadd.f32 %v324, %v325
        %v327 = vrot.slane %v326, 2
        %v328 = vadd.f32 %v326, %v327
        %v329 = vrot.slane %v328, 1
        %v330 = vadd.f32 %v328, %v329
        %v331 = vadd.f32 %v315, %v317
        %v332 = vadd.f32 %v331, %v319
        %v333 = vadd.f32 %v332, %v321
        %v334 = vrot.slane %v333, 4
        %v335 = vadd.f32 %v333, %v334
        %v336 = vrot.slane %v335, 2
        %v337 = vadd.f32 %v335, %v336
        %v338 = vrot.slane %v337, 1
        %v339 = vadd.f32 %v337, %v338
        %v340 = vadd.f32 %v330, 1e-12
        %v341 = vadd.f32 %v339, 1e-12
        %v342 = vrsqrt.pop %v340
        %v343 = vrsqrt.pop %v341
        %v344 = vlaneseq
        %v345 = vshrl.u32 %v344, 7
        %v346 = vlaneseq
        %v347 = vshrl.u32 %v346, 7
        %v348 = vsub.s32 0, %v347
        %v349 = vrot.slane %v313, %v348
        %v350 = vlaneseq
        %v351 = vshrl.u32 %v350, 7
        %v352 = vsub.s32 1, %v351
        %v353 = vrot.slane %v313, %v352
        %vm354 = vcmp.eq.s32.totalorder %v345, %v349
        %vm355 = vcmp.eq.s32.totalorder %v345, %v353
        %v356 = vsel %vm354, 1, 0
        %v357 = vsel %vm355, 1, 0
        %v358 = vcvt.s32.f32 %v356
        %v359 = vcvt.s32.f32 %v357
        %v360 = vmul.f32 %v358, %v342
        %v361 = vmul.f32 %v359, %v343
        %v364 = vrot.slane %v360, 3
        %v365 = vrot.slane %v361, 3
        %vm368 = vcmask 1044480
        %v369 = vsel %vm368, %v358, %v364
        %v370 = vsel %vm368, %v359, %v365
        %v371 = vld [vmem:[%s287] sm:$0xff]
        %v372 = vld [vmem:[%s287 + $0x8] sm:$0x3]
        %373 = vmatprep.subr.mxu0 0.0
        %374 = vmatpush1.xpose.msra.mxu0 0.0
        %375 = vmatprep.subr.mxu0 0.0
        %376 = vmatpush1.xpose.msra.mxu0 0.0
        %377 = vmatprep.subr.mxu0 0.0
        %378 = vmatpush1.xpose.msra.mxu0 0.0
        %379 = vmatprep.subr.mxu0 0.0
        %380 = vmatpush1.xpose.msra.mxu0 0.0
        %381 = vmatprep.subr.mxu0 0.0
        %382 = vmatpush1.xpose.msra.mxu0 0.0
        %383 = vmatprep.subr.mxu0 0.0
        %384 = vmatpush1.xpose.msra.mxu0 0.0
        %385 = vmatprep.subr.mxu0 0.0
        %386 = vmatpush1.xpose.msra.mxu0 0.0
        %387 = vmatprep.subr.mxu0 0.0
        %388 = vmatpush1.xpose.msra.mxu0 0.0
        %389 = vmatprep.subr.mxu0 0.0
        %390 = vmatpush1.xpose.msra.mxu0 0.0
        %391 = vmatprep.subr.mxu0 0.0
        %392 = vmatpush1.xpose.msra.mxu0 0.0
        %393 = vmatprep.subr.mxu0 0.0
        %394 = vmatpush1.xpose.msra.mxu0 0.0
        %395 = vmatprep.subr.mxu0 0.0
        %396 = vmatpush1.xpose.msra.mxu0 0.0
        %397 = vmatprep.subr.mxu0 %v312
        %398 = vmatpush1.xpose.msra.mxu0 %v311
        %399 = vmatprep.subr.mxu0 %v310
        %400 = vmatpush1.xpose.msra.mxu0 %v309
        %401 = vmatprep.subr.mxu0 %v308
        %402 = vmatpush1.xpose.msra.mxu0 %v307
        %403 = vmatprep.subr.mxu0 %v306
        %404 = vmatpush1.xpose.msra.mxu0 %v305
        %405 = vmatprep.subr.mxu0 0.0
        %406 = vmatpush2.xpose.msra.mxu0 0.0
        %407 = vmatprep.subr.mxu0 0.0
        %408 = vmatpush2.xpose.msra.mxu0 0.0
        %409 = vmatprep.subr.mxu0 0.0
        %410 = vmatpush2.xpose.msra.mxu0 0.0
        %411 = vmatprep.subr.mxu0 0.0
        %412 = vmatpush2.xpose.msra.mxu0 0.0
        %413 = vmatprep.subr.mxu0 0.0
        %414 = vmatpush2.xpose.msra.mxu0 0.0
        %415 = vmatprep.subr.mxu0 0.0
        %416 = vmatpush2.xpose.msra.mxu0 0.0
        %417 = vmatprep.subr.mxu0 0.0
        %418 = vmatpush2.xpose.msra.mxu0 0.0
        %419 = vmatprep.subr.mxu0 0.0
        %420 = vmatpush2.xpose.msra.mxu0 0.0
        %421 = vmatprep.subr.mxu0 0.0
        %422 = vmatpush2.xpose.msra.mxu0 0.0
        %423 = vmatprep.subr.mxu0 0.0
        %424 = vmatpush2.xpose.msra.mxu0 0.0
        %425 = vmatprep.subr.mxu0 0.0
        %426 = vmatpush2.xpose.msra.mxu0 0.0
        %427 = vmatprep.subr.mxu0 0.0
        %428 = vmatpush2.xpose.msra.mxu0 0.0
        %429 = vmatprep.subr.mxu0 0.0
        %430 = vmatpush2.xpose.msra.mxu0 0.0
        %431 = vmatprep.subr.mxu0 0.0
        %432 = vmatpush2.xpose.msra.mxu0 0.0
        %433 = vmatprep.subr.mxu0 0.0
        %434 = vmatpush2.xpose.msra.mxu0 0.0
        %435 = vmatprep.subr.mxu0 0.0
        %436 = vmatpush2.xpose.msra.mxu0 0.0
        %437 = vmatprep.mubr.f32.mxu0 %v370
        %438 = vmatmul.mubr.f32.gmra.mxu0 %v369
        %v439 = vpop.f32.mrf.mxu0
        %v440 = vadd.f32 0.0, %v439
        %v441 = vpop.f32.mrf.mxu0
        %442 = vmatprep.mubr.f32.mxu0 %v365
        %443 = vmatmul.mubr.f32.gmra.mxu0 %v364
        %v444 = vpop.f32.mrf.mxu0
        %v445 = vadd.f32 0.0, %v444
        %v446 = vpop.f32.mrf.mxu0
        %447 = vdwg.mxu0
        %v448 = vadd.f32 %v371, %v440
        %v449 = vadd.f32 %v372, %v445
        %vm450 = vcmask 261120
        %451 = vst.msk [vmem:[%s287] sm:$0xff] %vm450, %v448
        %vm452 = vcmask 254976
        %453 = vst.msk [vmem:[%s287 + $0x8] sm:$0x3] %vm452, %v449
        %v454 = vld [vmem:[%s294] sm:$0x1f]
        %v455 = vsel %vm368, %v358, 0.0
        %v456 = vsel %vm368, %v359, 0.0
        %v457 = vadd.f32 %v455, %v456
        %458 = vadd.xlane.f32.xlu0 %v457
        %v459 = vpop.xlane.xlu0 %458
        %v460 = vadd.f32 %v454, %v459
        %vm461 = vcmask 4096
        %462 = vst.msk [vmem:[%s294] sm:$0x1f] %vm461, %v460
        %p463 = scmp.lt.s32.totalorder %s26, 1
        %s464 = scalar_select %p463, %s26, 1
        %p465 = scmp.lt.s32.totalorder %s27, 0
        %s466 = scalar_select %p465, %s27, 0
        %s467 = smul.addr %s466, 2
        %s468 = smul.addr %s464, 2
        %s469 = sadd.s32 %s467, %s468
        %s470 = smul.addr %s469, 8
        %s471 = scalar_lea.vmem %s2, %s470
        %p472 = scmp.lt.s32.totalorder %s26, 1
        %s473 = scalar_select %p472, %s26, 1
        %p474 = scmp.lt.s32.totalorder %s27, 0
        %s475 = scalar_select %p474, %s27, 0
        %s476 = sadd.s32 %s475, %s473
        %s477 = smul.addr %s476, 8
        %s478 = scalar_lea.vmem %s3, %s477
        // Predicated region
        $region41: #{tpu_custom_call.1} parent=27 // pred_check
          %p479 = pneg %p120
        $region42: #{tpu_custom_call.1} parent=27 // pred_check_branch
          %481 = sbr.rel (%p479) target = $region44
        $region43: #{tpu_custom_call.1} parent=27 // pred_region
          _
        $region44: #{tpu_custom_call.1} parent=27 // pred_fallthru
          _
        // Predicated region
        $region45: #{tpu_custom_call.1} parent=27 // pred_check
          %p482 = pneg %p148
        $region46: #{tpu_custom_call.1} parent=27 // pred_check_branch
          %484 = sbr.rel (%p482) target = $region48
        $region47: #{tpu_custom_call.1} parent=27 // pred_region
          _
        $region48: #{tpu_custom_call.1} parent=27 // pred_fallthru
          _
      $region28: #{tpu_custom_call.1} parent=5 // pred_fallthru
        _
      %p485 = scmp.le.s32.totalorder 2, %s16
      // Predicated region
      $region49: #{tpu_custom_call.1} parent=5 // pred_check
        %p486 = pneg %p485
      $region50: #{tpu_custom_call.1} parent=5 // pred_check_branch
        %488 = sbr.rel (%p486) target = $region52
      $region51: #{tpu_custom_call.1} parent=5 // pred_region
        %s489 = ssub.s32 %s16, 2
        // Predicated region
        $region53: #{tpu_custom_call.1} parent=51 // pred_check
          %p490 = pneg %p126
        $region54: #{tpu_custom_call.1} parent=51 // pred_check_branch
          %492 = sbr.rel (%p490) target = $region56
        $region55: #{tpu_custom_call.1} parent=51 // pred_region
          %p493 = scmp.lt.s32.totalorder %s29, 1
          %s494 = scalar_select %p493, %s29, 1
          %p495 = scmp.lt.s32.totalorder %s30, 0
          %s496 = scalar_select %p495, %s30, 0
          %s497 = smul.addr %s496, 2
          %s498 = smul.addr %s494, 2
          %s499 = sadd.s32 %s497, %s498
          %s500 = smul.addr %s499, 8
          %s501 = scalar_lea.vmem %s2, %s500
        $region56: #{tpu_custom_call.1} parent=51 // pred_fallthru
          _
        // Predicated region
        $region57: #{tpu_custom_call.1} parent=51 // pred_check
          %p502 = pneg %p154
        $region58: #{tpu_custom_call.1} parent=51 // pred_check_branch
          %504 = sbr.rel (%p502) target = $region60
        $region59: #{tpu_custom_call.1} parent=51 // pred_region
          %p505 = scmp.lt.s32.totalorder %s29, 1
          %s506 = scalar_select %p505, %s29, 1
          %p507 = scmp.lt.s32.totalorder %s30, 0
          %s508 = scalar_select %p507, %s30, 0
          %s509 = sadd.s32 %s508, %s506
          %s510 = smul.addr %s509, 8
          %s511 = scalar_lea.vmem %s3, %s510
        $region60: #{tpu_custom_call.1} parent=51 // pred_fallthru
          _
      $region52: #{tpu_custom_call.1} parent=5 // pred_fallthru
        _
    $region6: #{tpu_custom_call.1} parent=1 // loop_footer
      %s20 = sadd.s32 1, %s16
    $region7: #{tpu_custom_call.1} parent=1 // loop_footer_branch
      %15 = sbr.rel target = $region3
    $region8: #{tpu_custom_call.1} parent=1 // loop_exit
      _
    %512 = vsyncpa [#allocation3], 1
    %s513 = scalar_lea.sflag [#allocation3], 1
    %514 = vsyncpa %s513, 1
    %515 = vsyncpa [#allocation5], 1
    %s516 = scalar_lea.sflag [#allocation5], 1
    %517 = vsyncpa %s516, 1

</llo_original>
